<compile_context>
chip_gen: v5e
topology: v5e:2x2
jax: 0.10.0
libtpu: 0.0.40
codegen_flags: <defaults>
</compile_context>

<pallas_src>
import math

import jax
import jax.numpy as jnp
from jax.experimental import pallas as pl
from jax.experimental.pallas import tpu as pltpu

EPS = 1e-6


def _pick_tile(length, target):
    """Largest multiple of 8 that divides `length` and is <= target (else length)."""
    for t in range(min(target, length), 7, -1):
        if length % t == 0 and t % 8 == 0:
            return t
    return length


def _rms(x):
    return x * jax.lax.rsqrt(jnp.mean(x * x, axis=-1, keepdims=True) + EPS)


def _vmem_limit_bytes():
    # ~85% of physical VMEM: ~108 MiB on v5e/v6e (128 MiB), ~54 MiB on v7x (64 MiB).
    try:
        cap = getattr(pltpu.get_tpu_info(), "vmem_capacity_bytes", None)
        if cap:
            return int(cap * 0.85)
    except Exception:
        pass
    return 48 * 1024 * 1024


# --------------- kernel A: RMSNorm + fused QKV projection + qk_norm -----------

def _make_qkv_kernel(D, n_heads, head_dim):
    inv_sqrt_hd = 1.0 / math.sqrt(head_dim)
    inv_hd = 1.0 / head_dim

    def kernel(x_ref, wqkv_ref, seg_ref, q_ref, k_ref, v_ref):
        # x_ref: (1, TR, D); wqkv_ref: (D, 3D) bf16; seg_ref: (D, nh) f32 indicator
        x = x_ref[0].astype(jnp.float32)                        # (TR, D)
        xn = _rms(x)
        # lane-dense projection: bf16 MXU operands, f32 accumulation
        qkv = jnp.dot(xn.astype(jnp.bfloat16), wqkv_ref[...],
                      preferred_element_type=jnp.float32)       # (TR, 3D) f32
        qf = qkv[:, :D]
        kf = qkv[:, D:2 * D]
        vf = qkv[:, 2 * D:]
        seg = seg_ref[...]                                      # (D, nh)

        def head_norm(t, extra_scale):
            # per-head sum-of-squares via block-diagonal ones matmul (MXU),
            # then broadcast the per-head scale back to lanes with a second
            # tiny matmul — no hd-wide lane slicing / relayout.
            ssq = jnp.dot(t * t, seg, preferred_element_type=jnp.float32)   # (TR, nh)
            sc = jax.lax.rsqrt(ssq * inv_hd + EPS) * extra_scale            # (TR, nh)
            lane_sc = jax.lax.dot_general(
                sc, seg, (((1,), (1,)), ((), ())),
                preferred_element_type=jnp.float32)                         # (TR, D)
            return t * lane_sc

        qn = head_norm(qf, inv_sqrt_hd)   # attention scale folded into q (free)
        kn = head_norm(kf, 1.0)

        # single lane-dense (TR, D) stores — no masked per-head writes
        q_ref[0] = qn.astype(q_ref.dtype)
        k_ref[0] = kn.astype(k_ref.dtype)
        v_ref[0] = vf.astype(v_ref.dtype)

    return kernel


# ------- kernel B: flash attention (online softmax) + o_proj + residual -------

def _make_attn_kernel(D, n_heads, head_dim):
    hd = head_dim

    def kernel(x_ref, q_ref, k_ref, v_ref, wo_ref, scale_ref, o_ref,
               m_sc, l_sc, acc_sc):
        ki = pl.program_id(2)

        @pl.when(ki == 0)
        def _():
            m_sc[...] = jnp.full(m_sc.shape, -jnp.inf, dtype=m_sc.dtype)
            l_sc[...] = jnp.zeros(l_sc.shape, dtype=l_sc.dtype)
            acc_sc[...] = jnp.zeros(acc_sc.shape, dtype=acc_sc.dtype)

        q = q_ref[0]                                    # (TQ, D) bf16, pre-scaled
        k = k_ref[0]                                    # (TK, D) bf16
        v = v_ref[0]                                    # (TK, D) bf16

        dn = (((1,), (1,)), ((), ()))                   # contract last dims
        # per-head scores from lane-dense operands (static lane slices feed the
        # MXU; contraction depth is head_dim either way for hd < 128).
        s = jnp.stack(
            [jax.lax.dot_general(q[:, h * hd:(h + 1) * hd],
                                 k[:, h * hd:(h + 1) * hd], dn,
                                 preferred_element_type=jnp.float32)
             for h in range(n_heads)], axis=0)          # (nh, TQ, TK) f32

        m_prev = m_sc[...]                              # (nh, TQ, 1)
        m_next = jnp.maximum(m_prev, jnp.max(s, axis=-1, keepdims=True))
        alpha = jnp.exp(m_prev - m_next)
        p = jnp.exp(s - m_next)                         # f32 (portable; v5e has no bf16 EUP)
        l_sc[...] = alpha * l_sc[...] + jnp.sum(p, axis=-1, keepdims=True)
        p16 = p.astype(jnp.bfloat16)
        pv = jnp.stack(
            [jnp.dot(p16[h], v[:, h * hd:(h + 1) * hd],
                     preferred_element_type=jnp.float32)
             for h in range(n_heads)], axis=0)          # (nh, TQ, hd)
        acc_sc[...] = alpha * acc_sc[...] + pv
        m_sc[...] = m_next

        @pl.when(ki == pl.num_programs(2) - 1)
        def _():
            # softmax denominator via EUP approximate reciprocal (frees VALU)
            inv_l = pl.reciprocal(l_sc[...], approx=True)      # (nh, TQ, 1)
            attn = acc_sc[...] * inv_l                          # (nh, TQ, hd)
            # lane-dense (TQ, D) heads slab, then ONE full-depth o_proj matmul
            attn2d = jnp.concatenate([attn[h] for h in range(n_heads)], axis=-1)
            proj = jnp.dot(attn2d.astype(jnp.bfloat16), wo_ref[...],
                           preferred_element_type=jnp.float32)  # (TQ, D)
            xq = x_ref[0].astype(jnp.float32)
            o_ref[0] = (xq + proj * scale_ref[...]).astype(o_ref.dtype)

    return kernel


def encoder_self_attention(x_NHWD, qkv_weight_3DD, o_weight_DD, o_scale_D,
                           head_dim, *, q_tile=512, kv_tile=256):
    N, H, W, D = x_NHWD.shape
    L = H * W
    hd = head_dim
    assert D % hd == 0
    nh = D // hd

    TR = _pick_tile(L, q_tile)      # row tile for the projection kernel
    TQ = TR                         # query tile
    TK = _pick_tile(L, kv_tile)     # kv tile (online-softmax accumulation axis)

    x_NLD = x_NHWD.reshape(N, L, D)
    # pre-transposed bf16 weights
    wqkv_t = qkv_weight_3DD.reshape(3 * D, D).T.astype(jnp.bfloat16)   # (D, 3D)
    wo_t = o_weight_DD.T.astype(jnp.bfloat16)                          # (D, D)
    scale_2d = o_scale_D.reshape(1, D).astype(jnp.float32)
    # block-diagonal head indicator (D, nh) for the vectorized per-head RMSNorm
    seg = (jnp.arange(D)[:, None] // hd == jnp.arange(nh)[None, :]).astype(jnp.float32)

    vmem_limit = _vmem_limit_bytes()
    f32b, bf16b = 4, 2
    x_bytes = N * L * D * x_NLD.dtype.itemsize

    # --------------------------- kernel A call ---------------------------
    qkv_cost = pl.CostEstimate(
        flops=int(2 * N * L * D * 3 * D),
        transcendentals=0,
        bytes_accessed=int(x_bytes + D * 3 * D * bf16b + D * nh * f32b
                           + 3 * N * L * D * bf16b))
    q_NLD, k_NLD, v_NLD = pl.pallas_call(
        _make_qkv_kernel(D, nh, hd),
        out_shape=(jax.ShapeDtypeStruct((N, L, D), jnp.bfloat16),) * 3,
        grid_spec=pltpu.PrefetchScalarGridSpec(
            num_scalar_prefetch=0,
            grid=(N, L // TR),
            in_specs=[
                pl.BlockSpec((1, TR, D), lambda n, r: (n, r, 0)),
                pl.BlockSpec((D, 3 * D), lambda n, r: (0, 0)),
                pl.BlockSpec((D, nh), lambda n, r: (0, 0)),
            ],
            out_specs=[
                pl.BlockSpec((1, TR, D), lambda n, r: (n, r, 0)),
                pl.BlockSpec((1, TR, D), lambda n, r: (n, r, 0)),
                pl.BlockSpec((1, TR, D), lambda n, r: (n, r, 0)),
            ],
        ),
        compiler_params=pltpu.CompilerParams(
            dimension_semantics=("parallel", "parallel"),
            vmem_limit_bytes=vmem_limit),
        cost_estimate=qkv_cost,
    )(x_NLD, wqkv_t, seg)

    # --------------------------- kernel B call ---------------------------
    attn_cost = pl.CostEstimate(
        flops=int(4 * N * nh * L * L * hd + 2 * N * L * D * D),
        transcendentals=int(N * nh * L * L),
        bytes_accessed=int(x_bytes + N * L * D * f32b
                           + N * L * D * bf16b                       # q
                           + 2 * N * L * D * bf16b * (L // TQ)       # k, v re-reads
                           + D * D * bf16b + D * f32b))
    out_NLD = pl.pallas_call(
        _make_attn_kernel(D, nh, hd),
        out_shape=jax.ShapeDtypeStruct((N, L, D), x_NHWD.dtype),
        grid_spec=pltpu.PrefetchScalarGridSpec(
            num_scalar_prefetch=0,
            grid=(N, L // TQ, L // TK),
            in_specs=[
                pl.BlockSpec((1, TQ, D), lambda n, qi, ki: (n, qi, 0)),   # x (residual)
                pl.BlockSpec((1, TQ, D), lambda n, qi, ki: (n, qi, 0)),   # q
                pl.BlockSpec((1, TK, D), lambda n, qi, ki: (n, ki, 0)),   # k
                pl.BlockSpec((1, TK, D), lambda n, qi, ki: (n, ki, 0)),   # v
                pl.BlockSpec((D, D), lambda n, qi, ki: (0, 0)),           # Wo^T
                pl.BlockSpec((1, D), lambda n, qi, ki: (0, 0)),           # o_scale
            ],
            out_specs=pl.BlockSpec((1, TQ, D), lambda n, qi, ki: (n, qi, 0)),
            scratch_shapes=[
                pltpu.VMEM((nh, TQ, 1), jnp.float32),    # running max
                pltpu.VMEM((nh, TQ, 1), jnp.float32),    # running denom
                pltpu.VMEM((nh, TQ, hd), jnp.float32),   # running numerator
            ],
        ),
        compiler_params=pltpu.CompilerParams(
            dimension_semantics=("parallel", "parallel", "arbitrary"),
            vmem_limit_bytes=vmem_limit),
        cost_estimate=attn_cost,
    )(x_NLD, q_NLD, k_NLD, v_NLD, wo_t, scale_2d)

    return out_NLD.reshape(N, H, W, D)

    # TODO(synk): rotary (AxialRoPE/UniformRoPE) branch and scale_temperature
    # path are not implemented; the module is exercised with rotary=None,
    # scale_temperature=False, which is a valid configuration.


def reference(x_NHWD, qkv_weight_3DD, o_weight_DD, o_scale_D, head_dim):
    """Pure-JAX f32 reference mirroring the PyTorch forward."""
    N, H, W, D = x_NHWD.shape
    L = H * W
    n_heads = D // head_dim
    x = x_NHWD.reshape(N, L, D).astype(jnp.float32)

    def rms(a):
        return a * jax.lax.rsqrt(jnp.mean(a * a, axis=-1, keepdims=True) + EPS)

    xn = rms(x)
    qkv = xn @ qkv_weight_3DD.reshape(3 * D, D).T               # (N, L, 3D)
    qkv = qkv.reshape(N, L, 3 * n_heads, head_dim)
    q, k, v = jnp.split(qkv, 3, axis=-2)                        # (N, L, h, d)
    q, k = rms(q), rms(k)
    q = q.transpose(0, 2, 1, 3)                                 # (N, h, L, d)
    k = k.transpose(0, 2, 1, 3)
    v = v.transpose(0, 2, 1, 3)
    s = jnp.einsum("nhqd,nhkd->nhqk", q, k) / math.sqrt(head_dim)
    p = jax.nn.softmax(s, axis=-1)
    a = jnp.einsum("nhqk,nhkd->nhqd", p, v)
    a = a.transpose(0, 2, 1, 3).reshape(N, L, D)
    out = x + (a @ o_weight_DD.T) * o_scale_D[None, None, :]
    return out.reshape(N, H, W, D).astype(x_NHWD.dtype)


if __name__ == "__main__":
    # small shapes: batch=2, H=W=8 (L=64 tokens), dim=32, head_dim=16 (2 heads)
    N, H, W, D = 2, 8, 8, 32
    head_dim = 16

    key = jax.random.PRNGKey(0)
    kx, kqkv, kwo, ksc = jax.random.split(key, 4)

    x_NHWD = jax.random.normal(kx, (N, H, W, D), dtype=jnp.float32)
    # qkv_weight ~ randn(3, D, D) / sqrt(D) / 2
    qkv_weight = jax.random.normal(kqkv, (3, D, D), jnp.float32) / math.sqrt(D) / 2.0
    # o_proj weight; scale is zero-initialised in the original module —
    # use nonzero deterministic values so the projection path is exercised.
    o_weight = jax.random.normal(kwo, (D, D), jnp.float32) / math.sqrt(D)
    o_scale = jax.random.normal(ksc, (D,), jnp.float32) * 0.1

    out = encoder_self_attention(x_NHWD, qkv_weight, o_weight, o_scale, head_dim)
    out = jax.block_until_ready(out)

    ref = reference(x_NHWD, qkv_weight, o_weight, o_scale, head_dim)
    assert out.shape == (N, H, W, D)
    max_err = float(jnp.max(jnp.abs(out - ref)))
    # bf16 MXU operands / bf16 q,k,v intermediates => loosened tolerance vs f32 ref
    assert jnp.allclose(out, ref, atol=2e-2, rtol=2e-2), max_err

    print("KERNEL_OK")
</pallas_src>

<mosaic_0001>
module attributes {stable_mosaic.version = 11 : i64} {
  func.func @kernel(%arg0: i32, %arg1: i32, %arg2: memref<1x64x32xf32, #tpu.memory_space<vmem>>, %arg3: memref<32x96xbf16, #tpu.memory_space<vmem>>, %arg4: memref<32x2xf32, #tpu.memory_space<vmem>>, %arg5: memref<1x64x32xbf16, #tpu.memory_space<vmem>>, %arg6: memref<1x64x32xbf16, #tpu.memory_space<vmem>>, %arg7: memref<1x64x32xbf16, #tpu.memory_space<vmem>>) attributes {dimension_semantics = [#tpu.dimension_semantics<parallel>, #tpu.dimension_semantics<parallel>], iteration_bounds = array<i64: 2, 1>, scalar_prefetch = 0 : i64, scratch_operands = 0 : i64, tpu.core_type = #tpu.core_type<tc>, window_params = [{transform_indices = @transform_0, window_bounds = array<i64: 1, 64, 32>}, {pipeline_mode = #tpu.pipeline_mode<synchronous>, transform_indices = @transform_1, window_bounds = array<i64: 32, 96>}, {pipeline_mode = #tpu.pipeline_mode<synchronous>, transform_indices = @transform_2, window_bounds = array<i64: 32, 2>}, {transform_indices = @transform_3, window_bounds = array<i64: 1, 64, 32>}, {transform_indices = @transform_4, window_bounds = array<i64: 1, 64, 32>}, {transform_indices = @transform_5, window_bounds = array<i64: 1, 64, 32>}]} {
    %c0 = arith.constant 0 : index
    %c0_0 = arith.constant 0 : index
    %c0_1 = arith.constant 0 : index
    %0 = vector.load %arg2[%c0, %c0_0, %c0_1] : memref<1x64x32xf32, #tpu.memory_space<vmem>>, vector<1x64x32xf32>
    %1 = vector.shape_cast %0 : vector<1x64x32xf32> to vector<64x32xf32>
    %2 = arith.mulf %1, %1 : vector<64x32xf32>
    %cst = arith.constant dense<0.000000e+00> : vector<64xf32>
    %3 = vector.multi_reduction <add>, %2, %cst [1] : vector<64x32xf32> to vector<64xf32>
    %4 = vector.shape_cast %3 : vector<64xf32> to vector<64x1xf32>
    %cst_2 = arith.constant 3.200000e+01 : f32
    %5 = vector.broadcast %cst_2 : f32 to vector<64x1xf32>
    %6 = arith.divf %4, %5 : vector<64x1xf32>
    %cst_3 = arith.constant 9.99999997E-7 : f32
    %7 = vector.broadcast %cst_3 : f32 to vector<64x1xf32>
    %8 = arith.addf %6, %7 : vector<64x1xf32>
    %9 = math.rsqrt %8 : vector<64x1xf32>
    %10 = vector.broadcast %9 : vector<64x1xf32> to vector<64x32xf32>
    %11 = arith.mulf %1, %10 : vector<64x32xf32>
    %12 = arith.truncf %11 : vector<64x32xf32> to vector<64x32xbf16>
    %c0_4 = arith.constant 0 : index
    %c0_5 = arith.constant 0 : index
    %13 = vector.load %arg3[%c0_4, %c0_5] : memref<32x96xbf16, #tpu.memory_space<vmem>>, vector<32x96xbf16>
    %cst_6 = arith.constant dense<0.000000e+00> : vector<64x96xf32>
    %14 = tpu.matmul %12, %13, %cst_6 {dimension_numbers = #tpu.dot_dimension_numbers<[1], [0], [0], [1], [0, 0, 1, 1], [], []>} : vector<64x32xbf16>, vector<32x96xbf16>, vector<64x96xf32> -> vector<64x96xf32>
    %15 = vector.extract_strided_slice %14 {offsets = [0, 0], sizes = [64, 32], strides = [1, 1]} : vector<64x96xf32> to vector<64x32xf32>
    %16 = vector.extract_strided_slice %14 {offsets = [0, 32], sizes = [64, 32], strides = [1, 1]} : vector<64x96xf32> to vector<64x32xf32>
    %17 = vector.extract_strided_slice %14 {offsets = [0, 64], sizes = [64, 32], strides = [1, 1]} : vector<64x96xf32> to vector<64x32xf32>
    %c0_7 = arith.constant 0 : index
    %c0_8 = arith.constant 0 : index
    %18 = vector.load %arg4[%c0_7, %c0_8] : memref<32x2xf32, #tpu.memory_space<vmem>>, vector<32x2xf32>
    %19 = arith.mulf %15, %15 : vector<64x32xf32>
    %cst_9 = arith.constant dense<0.000000e+00> : vector<64x2xf32>
    %20 = tpu.matmul %19, %18, %cst_9 {dimension_numbers = #tpu.dot_dimension_numbers<[1], [0], [0], [1], [0, 0, 1, 1], [], []>} : vector<64x32xf32>, vector<32x2xf32>, vector<64x2xf32> -> vector<64x2xf32>
    %cst_10 = arith.constant 6.250000e-02 : f32
    %21 = vector.broadcast %cst_10 : f32 to vector<64x2xf32>
    %22 = arith.mulf %20, %21 : vector<64x2xf32>
    %cst_11 = arith.constant 9.99999997E-7 : f32
    %23 = vector.broadcast %cst_11 : f32 to vector<64x2xf32>
    %24 = arith.addf %22, %23 : vector<64x2xf32>
    %25 = math.rsqrt %24 : vector<64x2xf32>
    %cst_12 = arith.constant 2.500000e-01 : f32
    %26 = vector.broadcast %cst_12 : f32 to vector<64x2xf32>
    %27 = arith.mulf %25, %26 : vector<64x2xf32>
    %cst_13 = arith.constant dense<0.000000e+00> : vector<64x32xf32>
    %28 = tpu.matmul %27, %18, %cst_13 {dimension_numbers = #tpu.dot_dimension_numbers<[1], [1], [0], [0], [0, 0, 1, 0], [], []>} : vector<64x2xf32>, vector<32x2xf32>, vector<64x32xf32> -> vector<64x32xf32>
    %29 = arith.mulf %15, %28 : vector<64x32xf32>
    %30 = arith.mulf %16, %16 : vector<64x32xf32>
    %cst_14 = arith.constant dense<0.000000e+00> : vector<64x2xf32>
    %31 = tpu.matmul %30, %18, %cst_14 {dimension_numbers = #tpu.dot_dimension_numbers<[1], [0], [0], [1], [0, 0, 1, 1], [], []>} : vector<64x32xf32>, vector<32x2xf32>, vector<64x2xf32> -> vector<64x2xf32>
    %cst_15 = arith.constant 6.250000e-02 : f32
    %32 = vector.broadcast %cst_15 : f32 to vector<64x2xf32>
    %33 = arith.mulf %31, %32 : vector<64x2xf32>
    %cst_16 = arith.constant 9.99999997E-7 : f32
    %34 = vector.broadcast %cst_16 : f32 to vector<64x2xf32>
    %35 = arith.addf %33, %34 : vector<64x2xf32>
    %36 = math.rsqrt %35 : vector<64x2xf32>
    %cst_17 = arith.constant 1.000000e+00 : f32
    %37 = vector.broadcast %cst_17 : f32 to vector<64x2xf32>
    %38 = arith.mulf %36, %37 : vector<64x2xf32>
    %cst_18 = arith.constant dense<0.000000e+00> : vector<64x32xf32>
    %39 = tpu.matmul %38, %18, %cst_18 {dimension_numbers = #tpu.dot_dimension_numbers<[1], [1], [0], [0], [0, 0, 1, 0], [], []>} : vector<64x2xf32>, vector<32x2xf32>, vector<64x32xf32> -> vector<64x32xf32>
    %40 = arith.mulf %16, %39 : vector<64x32xf32>
    %41 = arith.truncf %29 : vector<64x32xf32> to vector<64x32xbf16>
    %c0_19 = arith.constant 0 : index
    %c0_20 = arith.constant 0 : index
    %c0_21 = arith.constant 0 : index
    %42 = vector.load %arg5[%c0_19, %c0_20, %c0_21] : memref<1x64x32xbf16, #tpu.memory_space<vmem>>, vector<1x64x32xbf16>
    %43 = vector.shape_cast %42 : vector<1x64x32xbf16> to vector<64x32xbf16>
    %44 = vector.shape_cast %41 : vector<64x32xbf16> to vector<1x64x32xbf16>
    tpu.vector_store %arg5[%c0_19, %c0_20, %c0_21], %44 {strides = array<i32>} : memref<1x64x32xbf16, #tpu.memory_space<vmem>>, vector<1x64x32xbf16>,
    %45 = arith.truncf %40 : vector<64x32xf32> to vector<64x32xbf16>
    %c0_22 = arith.constant 0 : index
    %c0_23 = arith.constant 0 : index
    %c0_24 = arith.constant 0 : index
    %46 = vector.load %arg6[%c0_22, %c0_23, %c0_24] : memref<1x64x32xbf16, #tpu.memory_space<vmem>>, vector<1x64x32xbf16>
    %47 = vector.shape_cast %46 : vector<1x64x32xbf16> to vector<64x32xbf16>
    %48 = vector.shape_cast %45 : vector<64x32xbf16> to vector<1x64x32xbf16>
    tpu.vector_store %arg6[%c0_22, %c0_23, %c0_24], %48 {strides = array<i32>} : memref<1x64x32xbf16, #tpu.memory_space<vmem>>, vector<1x64x32xbf16>,
    %49 = arith.truncf %17 : vector<64x32xf32> to vector<64x32xbf16>
    %c0_25 = arith.constant 0 : index
    %c0_26 = arith.constant 0 : index
    %c0_27 = arith.constant 0 : index
    %50 = vector.load %arg7[%c0_25, %c0_26, %c0_27] : memref<1x64x32xbf16, #tpu.memory_space<vmem>>, vector<1x64x32xbf16>
    %51 = vector.shape_cast %50 : vector<1x64x32xbf16> to vector<64x32xbf16>
    %52 = vector.shape_cast %49 : vector<64x32xbf16> to vector<1x64x32xbf16>
    tpu.vector_store %arg7[%c0_25, %c0_26, %c0_27], %52 {strides = array<i32>} : memref<1x64x32xbf16, #tpu.memory_space<vmem>>, vector<1x64x32xbf16>,
    return
  }
  func.func @transform_0(%arg0: i32, %arg1: i32) -> (i32, i32, i32) {
    %c0_i32 = arith.constant 0 : i32
    %c0_i32_0 = arith.constant 0 : i32
    return %arg0, %arg1, %c0_i32 : i32, i32, i32
  }
  func.func @transform_1(%arg0: i32, %arg1: i32) -> (i32, i32) {
    %c0_i32 = arith.constant 0 : i32
    %c0_i32_0 = arith.constant 0 : i32
    %c0_i32_1 = arith.constant 0 : i32
    return %c0_i32, %c0_i32_0 : i32, i32
  }
  func.func @transform_2(%arg0: i32, %arg1: i32) -> (i32, i32) {
    %c0_i32 = arith.constant 0 : i32
    %c0_i32_0 = arith.constant 0 : i32
    %c0_i32_1 = arith.constant 0 : i32
    return %c0_i32, %c0_i32_0 : i32, i32
  }
  func.func @transform_3(%arg0: i32, %arg1: i32) -> (i32, i32, i32) {
    %c0_i32 = arith.constant 0 : i32
    %c0_i32_0 = arith.constant 0 : i32
    return %arg0, %arg1, %c0_i32 : i32, i32, i32
  }
  func.func @transform_4(%arg0: i32, %arg1: i32) -> (i32, i32, i32) {
    %c0_i32 = arith.constant 0 : i32
    %c0_i32_0 = arith.constant 0 : i32
    return %arg0, %arg1, %c0_i32 : i32, i32, i32
  }
  func.func @transform_5(%arg0: i32, %arg1: i32) -> (i32, i32, i32) {
    %c0_i32 = arith.constant 0 : i32
    %c0_i32_0 = arith.constant 0 : i32
    return %arg0, %arg1, %c0_i32 : i32, i32, i32
  }
}

</mosaic_0001>

<llo_original>
// kernel: tpu_custom_call.1
$region0: #{tpu_custom_call.1}
  #allocation0 [shape = 'u32[]', space=smem, size = 0x4, offset = 0x4, fixed_abs, tag = 'smem constant byte address 0x4 - core index']
  #allocation1 [shape = 'u32[72,128]{1,0:T(1,128)}', space=vmem, size = 0x9000, scoped, tag = 'internal scratch']
  %s0 = inlined_call_operand.vmem [shape: f32[2,64,32], index: 0, kind: input, shape index: {}]
  %s1 = inlined_call_operand.vmem [shape: bf16[32,96], index: 1, kind: input, shape index: {}]
  %s2 = inlined_call_operand.vmem [shape: f32[32,2], index: 2, kind: input, shape index: {}]
  %s3 = inlined_call_operand.vmem [shape: bf16[2,64,32], index: 3, kind: output, shape index: {0}]
  %s4 = inlined_call_operand.vmem [shape: bf16[2,64,32], index: 4, kind: output, shape index: {1}]
  %s5 = inlined_call_operand.vmem [shape: bf16[2,64,32], index: 5, kind: output, shape index: {2}]
  %6 = xla_tuple %s3, %s4, %s5
  %s7 = sld [smem:[#allocation0]]
  $region61: #{tpu_custom_call.1} parent=0
    _
  %s9 = ssub.s32 1, %s7
  %s10 = scalar_select 0, %s9, %s7
  loop: start=0, step=1, limit=4
  $region2: #{tpu_custom_call.1} parent=0 // loop_pre_header
    _
  $region3: #{tpu_custom_call.1} parent=0 // loop_header
    %s12 = sphi 0, %s16
    %p13 = scmp.ge.s32.totalorder %s12, 4
    %s19 = sphi 0, %s31
    %s20 = sphi 0, %s27
    %s21 = sphi 0, %s19
    %s22 = sphi 0, %s20
    %s23 = sphi 0, %s21
    %s24 = sphi 0, %s22
    %s36 = sphi 0, %s38
    %s39 = sphi 0, %s36
    %s40 = sphi 0, %s39
    %s56 = sphi 0, %s40
    %s60 = sphi 0, %s60
    %s62 = sphi 0, %s60
    %s63 = sphi 0, %s62
    %s77 = sphi 0, %s63
    %s81 = sphi 0, %s81
    %s83 = sphi 0, %s81
    %s84 = sphi 0, %s83
    %s98 = sphi 0, %s84
    %s106 = sphi 0, %s108
    %s109 = sphi 0, %s106
    %s110 = sphi 0, %s109
    %s126 = sphi 0, %s110
    %s134 = sphi 0, %s136
    %s137 = sphi 0, %s134
    %s138 = sphi 0, %s137
    %s154 = sphi 0, %s138
    %s162 = sphi 0, %s164
    %s165 = sphi 0, %s162
    %s166 = sphi 0, %s165
    %s182 = sphi 0, %s166
  $region4: #{tpu_custom_call.1} parent=0 // loop_header_branch
    %15 = sbr.rel (%p13) target = $region8
  $region5: #{tpu_custom_call.1} parent=0 // loop_body
    %s17 = ssub.s32 %s12, 1
    %s18 = ssub.s32 %s12, 2
    %s25 = sadd.s32 1, %s20
    %p26 = scmp.ge.s32.totalorder %s25, 1
    %s27 = scalar_select %p26, 0, %s25
    %s28 = sadd.s32 1, %s19
    %s29 = scalar_select %p26, %s28, %s19
    %p30 = scmp.ge.s32.totalorder %s29, 2
    %s31 = scalar_select %p30, 0, %s29
    %s32 = ssub.s32 %s19, %s31
    %s33 = ssub.s32 %s20, %s27
    %s34 = sor.u32 %s32, %s33
    %p35 = scmp.eq.s32.totalorder %s34, 0
    %s37 = sadd.s32 %s36, 1
    %s38 = scalar_select %p35, %s36, %s37
    %p41 = pneg %p35
    %p42 = scmp.eq.s32.totalorder %s12, 1
    %p43 = por %p41, %p42
    %p44 = scmp.ne.s32.totalorder %s36, %s39
    %p45 = scmp.eq.s32.totalorder %s12, 0
    %p46 = por %p44, %p45
    %p47 = scmp.ne.s32.totalorder %s36, %s39
    %p48 = scmp.eq.s32.totalorder %s17, 1
    %p49 = por %p47, %p48
    %p50 = scmp.ne.s32.totalorder %s39, %s40
    %p51 = scmp.eq.s32.totalorder %s17, 0
    %p52 = por %p50, %p51
    %p53 = scmp.ne.s32.totalorder %s39, %s40
    %p54 = scmp.eq.s32.totalorder %s18, 1
    %p55 = por %p53, %p54
    %p57 = scmp.ne.s32.totalorder %s40, %s56
    %p58 = scmp.eq.s32.totalorder %s18, 0
    %p59 = por %p57, %p58
    %s61 = sadd.s32 %s60, 1
    %p64 = scmp.eq.s32.totalorder %s12, 1
    %p65 = scmp.ne.s32.totalorder %s60, %s62
    %p66 = scmp.eq.s32.totalorder %s12, 0
    %p67 = por %p65, %p66
    %p68 = scmp.ne.s32.totalorder %s60, %s62
    %p69 = scmp.eq.s32.totalorder %s17, 1
    %p70 = por %p68, %p69
    %p71 = scmp.ne.s32.totalorder %s62, %s63
    %p72 = scmp.eq.s32.totalorder %s17, 0
    %p73 = por %p71, %p72
    %p74 = scmp.ne.s32.totalorder %s62, %s63
    %p75 = scmp.eq.s32.totalorder %s18, 1
    %p76 = por %p74, %p75
    %p78 = scmp.ne.s32.totalorder %s63, %s77
    %p79 = scmp.eq.s32.totalorder %s18, 0
    %p80 = por %p78, %p79
    %s82 = sadd.s32 %s81, 1
    %p85 = scmp.eq.s32.totalorder %s12, 1
    %p86 = scmp.ne.s32.totalorder %s81, %s83
    %p87 = scmp.eq.s32.totalorder %s12, 0
    %p88 = por %p86, %p87
    %p89 = scmp.ne.s32.totalorder %s81, %s83
    %p90 = scmp.eq.s32.totalorder %s17, 1
    %p91 = por %p89, %p90
    %p92 = scmp.ne.s32.totalorder %s83, %s84
    %p93 = scmp.eq.s32.totalorder %s17, 0
    %p94 = por %p92, %p93
    %p95 = scmp.ne.s32.totalorder %s83, %s84
    %p96 = scmp.eq.s32.totalorder %s18, 1
    %p97 = por %p95, %p96
    %p99 = scmp.ne.s32.totalorder %s84, %s98
    %p100 = scmp.eq.s32.totalorder %s18, 0
    %p101 = por %p99, %p100
    %s102 = ssub.s32 %s19, %s31
    %s103 = ssub.s32 %s20, %s27
    %s104 = sor.u32 %s102, %s103
    %p105 = scmp.eq.s32.totalorder %s104, 0
    %s107 = sadd.s32 %s106, 1
    %s108 = scalar_select %p105, %s106, %s107
    %p111 = pneg %p105
    %p112 = scmp.eq.s32.totalorder %s12, 1
    %p113 = por %p111, %p112
    %p114 = scmp.ne.s32.totalorder %s106, %s109
    %p115 = scmp.eq.s32.totalorder %s12, 0
    %p116 = por %p114, %p115
    %p117 = scmp.ne.s32.totalorder %s106, %s109
    %p118 = scmp.eq.s32.totalorder %s17, 1
    %p119 = por %p117, %p118
    %p120 = scmp.ne.s32.totalorder %s109, %s110
    %p121 = scmp.eq.s32.totalorder %s17, 0
    %p122 = por %p120, %p121
    %p123 = scmp.ne.s32.totalorder %s109, %s110
    %p124 = scmp.eq.s32.totalorder %s18, 1
    %p125 = por %p123, %p124
    %p127 = scmp.ne.s32.totalorder %s110, %s126
    %p128 = scmp.eq.s32.totalorder %s18, 0
    %p129 = por %p127, %p128
    %s130 = ssub.s32 %s19, %s31
    %s131 = ssub.s32 %s20, %s27
    %s132 = sor.u32 %s130, %s131
    %p133 = scmp.eq.s32.totalorder %s132, 0
    %s135 = sadd.s32 %s134, 1
    %s136 = scalar_select %p133, %s134, %s135
    %p139 = pneg %p133
    %p140 = scmp.eq.s32.totalorder %s12, 1
    %p141 = por %p139, %p140
    %p142 = scmp.ne.s32.totalorder %s134, %s137
    %p143 = scmp.eq.s32.totalorder %s12, 0
    %p144 = por %p142, %p143
    %p145 = scmp.ne.s32.totalorder %s134, %s137
    %p146 = scmp.eq.s32.totalorder %s17, 1
    %p147 = por %p145, %p146
    %p148 = scmp.ne.s32.totalorder %s137, %s138
    %p149 = scmp.eq.s32.totalorder %s17, 0
    %p150 = por %p148, %p149
    %p151 = scmp.ne.s32.totalorder %s137, %s138
    %p152 = scmp.eq.s32.totalorder %s18, 1
    %p153 = por %p151, %p152
    %p155 = scmp.ne.s32.totalorder %s138, %s154
    %p156 = scmp.eq.s32.totalorder %s18, 0
    %p157 = por %p155, %p156
    %s158 = ssub.s32 %s19, %s31
    %s159 = ssub.s32 %s20, %s27
    %s160 = sor.u32 %s158, %s159
    %p161 = scmp.eq.s32.totalorder %s160, 0
    %s163 = sadd.s32 %s162, 1
    %s164 = scalar_select %p161, %s162, %s163
    %p167 = pneg %p161
    %p168 = scmp.eq.s32.totalorder %s12, 1
    %p169 = por %p167, %p168
    %p170 = scmp.ne.s32.totalorder %s162, %s165
    %p171 = scmp.eq.s32.totalorder %s12, 0
    %p172 = por %p170, %p171
    %p173 = scmp.ne.s32.totalorder %s162, %s165
    %p174 = scmp.eq.s32.totalorder %s17, 1
    %p175 = por %p173, %p174
    %p176 = scmp.ne.s32.totalorder %s165, %s166
    %p177 = scmp.eq.s32.totalorder %s17, 0
    %p178 = por %p176, %p177
    %p179 = scmp.ne.s32.totalorder %s165, %s166
    %p180 = scmp.eq.s32.totalorder %s18, 1
    %p181 = por %p179, %p180
    %p183 = scmp.ne.s32.totalorder %s166, %s182
    %p184 = scmp.eq.s32.totalorder %s18, 0
    %p185 = por %p183, %p184
    %p186 = scmp.le.s32.totalorder 1, %s12
    %p187 = scmp.lt.s32.totalorder %s12, 3
    %p188 = pnand %p186, %p187
    %p189 = pneg %p188
    // Predicated region
    $region9: #{tpu_custom_call.1} parent=5 // pred_check
      _
    $region10: #{tpu_custom_call.1} parent=5 // pred_check_branch
      %191 = sbr.rel (%p188) target = $region12
    $region11: #{tpu_custom_call.1} parent=5 // pred_region
      %s192 = ssub.s32 %s12, 1
      // Predicated region
      $region13: #{tpu_custom_call.1} parent=11 // pred_check
        %p193 = pneg %p73
      $region14: #{tpu_custom_call.1} parent=11 // pred_check_branch
        %195 = sbr.rel (%p193) target = $region16
      $region15: #{tpu_custom_call.1} parent=11 // pred_region
        _
      $region16: #{tpu_custom_call.1} parent=11 // pred_fallthru
        _
      // Predicated region
      $region17: #{tpu_custom_call.1} parent=11 // pred_check
        %p196 = pneg %p94
      $region18: #{tpu_custom_call.1} parent=11 // pred_check_branch
        %198 = sbr.rel (%p196) target = $region20
      $region19: #{tpu_custom_call.1} parent=11 // pred_region
        _
      $region20: #{tpu_custom_call.1} parent=11 // pred_fallthru
        _
    $region12: #{tpu_custom_call.1} parent=5 // pred_fallthru
      _
    %p199 = scmp.lt.s32.totalorder %s12, 2
    // Predicated region
    $region21: #{tpu_custom_call.1} parent=5 // pred_check
      %p200 = pneg %p199
    $region22: #{tpu_custom_call.1} parent=5 // pred_check_branch
      %202 = sbr.rel (%p200) target = $region24
    $region23: #{tpu_custom_call.1} parent=5 // pred_region
      // Predicated region
      $region25: #{tpu_custom_call.1} parent=23 // pred_check
        %p203 = pneg %p46
      $region26: #{tpu_custom_call.1} parent=23 // pred_check_branch
        %205 = sbr.rel (%p203) target = $region28
      $region27: #{tpu_custom_call.1} parent=23 // pred_region
        %s206 = smul.u32 8, %s20
        %p207 = scmp.lt.s32.totalorder %s19, 1
        %s208 = scalar_select %p207, %s19, 1
        %p209 = scmp.lt.s32.totalorder %s206, 7
        %s210 = scalar_select %p209, %s206, 7
        %s211 = smul.addr %s208, 8
        %s212 = sadd.s32 %s210, %s211
        %s213 = smul.addr %s212, 8
        %s214 = scalar_lea.vmem %s0, %s213
        %s215 = smul.u32 8, %s20
      $region28: #{tpu_custom_call.1} parent=23 // pred_fallthru
        _
    $region24: #{tpu_custom_call.1} parent=5 // pred_fallthru
      _
    %p216 = scmp.le.s32.totalorder 1, %s12
    %p217 = scmp.lt.s32.totalorder %s12, 3
    %p218 = pnand %p216, %p217
    %p219 = pneg %p218
    // Predicated region
    $region29: #{tpu_custom_call.1} parent=5 // pred_check
      _
    $region30: #{tpu_custom_call.1} parent=5 // pred_check_branch
      %221 = sbr.rel (%p218) target = $region32
    $region31: #{tpu_custom_call.1} parent=5 // pred_region
      %s222 = ssub.s32 %s12, 1
      %s223 = smul.u32 8, %s22
      %p224 = scmp.lt.s32.totalorder %s21, 1
      %s225 = scalar_select %p224, %s21, 1
      %p226 = scmp.lt.s32.totalorder %s223, 7
      %s227 = scalar_select %p226, %s223, 7
      %s228 = smul.addr %s225, 8
      %s229 = sadd.s32 %s227, %s228
      %s230 = smul.addr %s229, 8
      %s231 = scalar_lea.vmem %s0, %s230
      %p232 = pneg %p52
      %p233 = pneg %p49
      %p234 = pneg %p73
      %p235 = pneg %p70
      %p236 = pneg %p94
      %p237 = pneg %p91
      %p238 = pneg %p122
      %p239 = pneg %p119
      %s240 = smul.u32 8, %s22
      %p241 = scmp.lt.s32.totalorder %s21, 1
      %s242 = scalar_select %p241, %s21, 1
      %p243 = scmp.lt.s32.totalorder %s240, 7
      %s244 = scalar_select %p243, %s240, 7
      %s245 = smul.addr %s242, 8
      %s246 = sadd.s32 %s244, %s245
      %s247 = smul.addr %s246, 4
      %s248 = scalar_lea.vmem %s3, %s247
      %p249 = pneg %p150
      %p250 = pneg %p147
      %s251 = smul.u32 8, %s22
      %p252 = scmp.lt.s32.totalorder %s21, 1
      %s253 = scalar_select %p252, %s21, 1
      %p254 = scmp.lt.s32.totalorder %s251, 7
      %s255 = scalar_select %p254, %s251, 7
      %s256 = smul.addr %s253, 8
      %s257 = sadd.s32 %s255, %s256
      %s258 = smul.addr %s257, 4
      %s259 = scalar_lea.vmem %s4, %s258
      %p260 = pneg %p178
      %p261 = pneg %p175
      %s262 = smul.u32 8, %s22
      %p263 = scmp.lt.s32.totalorder %s21, 1
      %s264 = scalar_select %p263, %s21, 1
      %p265 = scmp.lt.s32.totalorder %s262, 7
      %s266 = scalar_select %p265, %s262, 7
      %s267 = smul.addr %s264, 8
      %s268 = sadd.s32 %s266, %s267
      %s269 = smul.addr %s268, 4
      %s270 = scalar_lea.vmem %s5, %s269
      %s271 = smul.u32 8, %s22
      %p272 = scmp.lt.s32.totalorder %s21, 1
      %s273 = scalar_select %p272, %s21, 1
      %p274 = scmp.lt.s32.totalorder %s271, 7
      %s275 = scalar_select %p274, %s271, 7
      %s276 = smul.addr %s273, 8
      %s277 = sadd.s32 %s275, %s276
      %s278 = smul.addr %s277, 8
      %s279 = scalar_lea.vmem %s0, %s278
      %s280 = smul.u32 8, %s22
      %s281 = smul.u32 8, %s22
      %p282 = scmp.lt.s32.totalorder %s21, 1
      %s283 = scalar_select %p282, %s21, 1
      %p284 = scmp.lt.s32.totalorder %s281, 7
      %s285 = scalar_select %p284, %s281, 7
      %s286 = smul.addr %s283, 8
      %s287 = sadd.s32 %s285, %s286
      %s288 = smul.addr %s287, 4
      %s289 = scalar_lea.vmem %s3, %s288
      %s290 = smul.u32 8, %s22
      %s291 = smul.u32 8, %s22
      %p292 = scmp.lt.s32.totalorder %s21, 1
      %s293 = scalar_select %p292, %s21, 1
      %p294 = scmp.lt.s32.totalorder %s291, 7
      %s295 = scalar_select %p294, %s291, 7
      %s296 = smul.addr %s293, 8
      %s297 = sadd.s32 %s295, %s296
      %s298 = smul.addr %s297, 4
      %s299 = scalar_lea.vmem %s4, %s298
      %s300 = smul.u32 8, %s22
      %s301 = smul.u32 8, %s22
      %p302 = scmp.lt.s32.totalorder %s21, 1
      %s303 = scalar_select %p302, %s21, 1
      %p304 = scmp.lt.s32.totalorder %s301, 7
      %s305 = scalar_select %p304, %s301, 7
      %s306 = smul.addr %s303, 8
      %s307 = sadd.s32 %s305, %s306
      %s308 = smul.addr %s307, 4
      %s309 = scalar_lea.vmem %s5, %s308
      %s310 = smul.u32 8, %s22
      %v312 = vld [vmem:[%s279] sm:$0xff]
      %v313 = vld [vmem:[%s279 + $0x8] sm:$0xff]
      %v314 = vld [vmem:[%s279 + $0x10] sm:$0xff]
      %v315 = vld [vmem:[%s279 + $0x18] sm:$0xff]
      %v316 = vld [vmem:[%s279 + $0x20] sm:$0xff]
      %v317 = vld [vmem:[%s279 + $0x28] sm:$0xff]
      %v318 = vld [vmem:[%s279 + $0x30] sm:$0xff]
      %v319 = vld [vmem:[%s279 + $0x38] sm:$0xff]
      %v320 = vmul.f32 %v312, %v312
      %v321 = vmul.f32 %v313, %v313
      %v322 = vmul.f32 %v314, %v314
      %v323 = vmul.f32 %v315, %v315
      %v324 = vmul.f32 %v316, %v316
      %v325 = vmul.f32 %v317, %v317
      %v326 = vmul.f32 %v318, %v318
      %v327 = vmul.f32 %v319, %v319
      %vm328 = vcmask 261120
      %v329 = vsel %vm328, %v320, 0.0
      %330 = vadd.xlane.f32.xlu0 %v329
      %v331 = vpop.xlane.xlu0 %330
      %v332 = vsel %vm328, %v321, 0.0
      %333 = vadd.xlane.f32.xlu0 %v332
      %v334 = vpop.xlane.xlu0 %333
      %v335 = vsel %vm328, %v322, 0.0
      %336 = vadd.xlane.f32.xlu0 %v335
      %v337 = vpop.xlane.xlu0 %336
      %v338 = vsel %vm328, %v323, 0.0
      %339 = vadd.xlane.f32.xlu0 %v338
      %v340 = vpop.xlane.xlu0 %339
      %v341 = vsel %vm328, %v324, 0.0
      %342 = vadd.xlane.f32.xlu0 %v341
      %v343 = vpop.xlane.xlu0 %342
      %v344 = vsel %vm328, %v325, 0.0
      %345 = vadd.xlane.f32.xlu0 %v344
      %v346 = vpop.xlane.xlu0 %345
      %v347 = vsel %vm328, %v326, 0.0
      %348 = vadd.xlane.f32.xlu0 %v347
      %v349 = vpop.xlane.xlu0 %348
      %v350 = vsel %vm328, %v327, 0.0
      %351 = vadd.xlane.f32.xlu0 %v350
      %v352 = vpop.xlane.xlu0 %351
      %v353 = vrcp.pop 32.0
      %v354 = vmul.f32 32.0, %v353
      %v355 = vsub.f32 1.0, %v354
      %v356 = vmul.f32 %v353, %v355
      %v357 = vadd.f32 %v353, %v356
      %vm358 = vweird.f32 %v353
      %v359 = vsel %vm358, %v353, %v357
      %v360 = vmul.f32 %v331, %v359
      %v361 = vmul.f32 %v334, %v359
      %v362 = vmul.f32 %v337, %v359
      %v363 = vmul.f32 %v340, %v359
      %v364 = vmul.f32 %v343, %v359
      %v365 = vmul.f32 %v346, %v359
      %v366 = vmul.f32 %v349, %v359
      %v367 = vmul.f32 %v352, %v359
      %v368 = vadd.f32 %v360, 1e-06
      %v369 = vadd.f32 %v361, 1e-06
      %v370 = vadd.f32 %v362, 1e-06
      %v371 = vadd.f32 %v363, 1e-06
      %v372 = vadd.f32 %v364, 1e-06
      %v373 = vadd.f32 %v365, 1e-06
      %v374 = vadd.f32 %v366, 1e-06
      %v375 = vadd.f32 %v367, 1e-06
      %v376 = vrsqrt.pop %v368
      %v377 = vmul.f32 %v376, %v368
      %v378 = vmul.f32 %v377, %v376
      %v379 = vmul.f32 0.5, %v378
      %v380 = vsub.f32 1.5, %v379
      %v381 = vmul.f32 %v376, %v380
      %vm382 = vweird.f32 %v368
      %vm383 = vweird.f32 %v376
      %vm384 = vmor %vm382, %vm383
      %v385 = vsel %vm384, %v376, %v381
      %v386 = vrsqrt.pop %v369
      %v387 = vmul.f32 %v386, %v369
      %v388 = vmul.f32 %v387, %v386
      %v389 = vmul.f32 0.5, %v388
      %v390 = vsub.f32 1.5, %v389
      %v391 = vmul.f32 %v386, %v390
      %vm392 = vweird.f32 %v369
      %vm393 = vweird.f32 %v386
      %vm394 = vmor %vm392, %vm393
      %v395 = vsel %vm394, %v386, %v391
      %v396 = vrsqrt.pop %v370
      %v397 = vmul.f32 %v396, %v370
      %v398 = vmul.f32 %v397, %v396
      %v399 = vmul.f32 0.5, %v398
      %v400 = vsub.f32 1.5, %v399
      %v401 = vmul.f32 %v396, %v400
      %vm402 = vweird.f32 %v370
      %vm403 = vweird.f32 %v396
      %vm404 = vmor %vm402, %vm403
      %v405 = vsel %vm404, %v396, %v401
      %v406 = vrsqrt.pop %v371
      %v407 = vmul.f32 %v406, %v371
      %v408 = vmul.f32 %v407, %v406
      %v409 = vmul.f32 0.5, %v408
      %v410 = vsub.f32 1.5, %v409
      %v411 = vmul.f32 %v406, %v410
      %vm412 = vweird.f32 %v371
      %vm413 = vweird.f32 %v406
      %vm414 = vmor %vm412, %vm413
      %v415 = vsel %vm414, %v406, %v411
      %v416 = vrsqrt.pop %v372
      %v417 = vmul.f32 %v416, %v372
      %v418 = vmul.f32 %v417, %v416
      %v419 = vmul.f32 0.5, %v418
      %v420 = vsub.f32 1.5, %v419
      %v421 = vmul.f32 %v416, %v420
      %vm422 = vweird.f32 %v372
      %vm423 = vweird.f32 %v416
      %vm424 = vmor %vm422, %vm423
      %v425 = vsel %vm424, %v416, %v421
      %v426 = vrsqrt.pop %v373
      %v427 = vmul.f32 %v426, %v373
      %v428 = vmul.f32 %v427, %v426
      %v429 = vmul.f32 0.5, %v428
      %v430 = vsub.f32 1.5, %v429
      %v431 = vmul.f32 %v426, %v430
      %vm432 = vweird.f32 %v373
      %vm433 = vweird.f32 %v426
      %vm434 = vmor %vm432, %vm433
      %v435 = vsel %vm434, %v426, %v431
      %v436 = vrsqrt.pop %v374
      %v437 = vmul.f32 %v436, %v374
      %v438 = vmul.f32 %v437, %v436
      %v439 = vmul.f32 0.5, %v438
      %v440 = vsub.f32 1.5, %v439
      %v441 = vmul.f32 %v436, %v440
      %vm442 = vweird.f32 %v374
      %vm443 = vweird.f32 %v436
      %vm444 = vmor %vm442, %vm443
      %v445 = vsel %vm444, %v436, %v441
      %v446 = vrsqrt.pop %v375
      %v447 = vmul.f32 %v446, %v375
      %v448 = vmul.f32 %v447, %v446
      %v449 = vmul.f32 0.5, %v448
      %v450 = vsub.f32 1.5, %v449
      %v451 = vmul.f32 %v446, %v450
      %vm452 = vweird.f32 %v375
      %vm453 = vweird.f32 %v446
      %vm454 = vmor %vm452, %vm453
      %v455 = vsel %vm454, %v446, %v451
      %v456 = vmul.f32 %v312, %v385
      %v457 = vmul.f32 %v313, %v395
      %v458 = vmul.f32 %v314, %v405
      %v459 = vmul.f32 %v315, %v415
      %v460 = vmul.f32 %v316, %v425
      %v461 = vmul.f32 %v317, %v435
      %v462 = vmul.f32 %v318, %v445
      %v463 = vmul.f32 %v319, %v455
      %v464 = vpack.c.bf16 %v457, %v456
      %v465 = vpack.c.bf16 %v459, %v458
      %v466 = vpack.c.bf16 %v461, %v460
      %v467 = vpack.c.bf16 %v463, %v462
      %v468 = vld [vmem:[%s1] sm:$0xf]
      %v469 = vld [vmem:[%s1 + $0x4] sm:$0xf]
      %v470 = vld [vmem:[%s1 + $0x8] sm:$0xf]
      %v471 = vld [vmem:[%s1 + $0xc] sm:$0xf]
      %v476 = vunpack.c.l.b16 %v468
      %v477 = vunpack.c.l.b16 %v469
      %v478 = vunpack.c.l.b16 %v470
      %v479 = vunpack.c.l.b16 %v471
      %v480 = vpack.c.b16 %v477, %v476
      %v481 = vpack.c.b16 %v479, %v478
      %v485 = vsel %vm328, %v464, 0
      %v488 = vsel %vm328, %v465, 0
      %v491 = vsel %vm328, %v466, 0
      %v494 = vsel %vm328, %v467, 0
      %496 = vmatpush.bf16.msra.mxu0 0
      %497 = vmatpush.bf16.msra.mxu0 0
      %498 = vmatpush.bf16.msra.mxu0 0
      %499 = vmatpush.bf16.msra.mxu0 0
      %500 = vmatpush.bf16.msra.mxu0 0
      %501 = vmatpush.bf16.msra.mxu0 0
      %502 = vmatpush.bf16.msra.mxu0 %v481
      %503 = vmatpush.bf16.msra.mxu0 %v480
      %504 = vmatmul.bf16.gmra.mxu0 %v485
      %v505 = vpop.f32.mrf.mxu0
      %v506 = vadd.f32 0.0, %v505
      %v507 = vpop.f32.mrf.mxu0
      %v508 = vadd.f32 0.0, %v507
      %509 = vmatmul.bf16.gmra.mxu0 %v488
      %v510 = vpop.f32.mrf.mxu0
      %v511 = vadd.f32 0.0, %v510
      %v512 = vpop.f32.mrf.mxu0
      %v513 = vadd.f32 0.0, %v512
      %514 = vmatmul.bf16.gmra.mxu0 %v491
      %v515 = vpop.f32.mrf.mxu0
      %v516 = vadd.f32 0.0, %v515
      %v517 = vpop.f32.mrf.mxu0
      %v518 = vadd.f32 0.0, %v517
      %519 = vmatmul.bf16.gmra.mxu0 %v494
      %v520 = vpop.f32.mrf.mxu0
      %v521 = vadd.f32 0.0, %v520
      %v522 = vpop.f32.mrf.mxu0
      %v523 = vadd.f32 0.0, %v522
      %524 = vdwg.mxu0
      %v525 = vld [vmem:[%s2] sm:$0xff]
      %v526 = vld [vmem:[%s2 + $0x8] sm:$0xff]
      %v527 = vld [vmem:[%s2 + $0x10] sm:$0xff]
      %v528 = vld [vmem:[%s2 + $0x18] sm:$0xff]
      %v529 = vmul.f32 %v506, %v506
      %v530 = vmul.f32 %v508, %v508
      %v531 = vmul.f32 %v511, %v511
      %v532 = vmul.f32 %v513, %v513
      %v533 = vmul.f32 %v516, %v516
      %v534 = vmul.f32 %v518, %v518
      %v535 = vmul.f32 %v521, %v521
      %v536 = vmul.f32 %v523, %v523
      %v538 = vsel %vm328, %v529, 0
      %v541 = vsel %vm328, %v530, 0
      %v544 = vsel %vm328, %v531, 0
      %v547 = vsel %vm328, %v532, 0
      %v550 = vsel %vm328, %v533, 0
      %v553 = vsel %vm328, %v534, 0
      %v556 = vsel %vm328, %v535, 0
      %v559 = vsel %vm328, %v536, 0
      %561 = vmatpush.msra.mxu0 0.0
      %562 = vmatpush.msra.mxu0 0.0
      %563 = vmatpush.msra.mxu0 0.0
      %564 = vmatpush.msra.mxu0 0.0
      %565 = vmatpush.msra.mxu0 0.0
      %566 = vmatpush.msra.mxu0 0.0
      %567 = vmatpush.msra.mxu0 0.0
      %568 = vmatpush.msra.mxu0 0.0
      %569 = vmatpush.msra.mxu0 0.0
      %570 = vmatpush.msra.mxu0 0.0
      %571 = vmatpush.msra.mxu0 0.0
      %572 = vmatpush.msra.mxu0 0.0
      %573 = vmatpush.msra.mxu0 %v528
      %574 = vmatpush.msra.mxu0 %v527
      %575 = vmatpush.msra.mxu0 %v526
      %576 = vmatpush.msra.mxu0 %v525
      %577 = vmatmul.f32.gmra.mxu0 %v538
      %v578 = vpop.f32.mrf.mxu0
      %v579 = vadd.f32 0.0, %v578
      %580 = vmatmul.f32.gmra.mxu0 %v541
      %v581 = vpop.f32.mrf.mxu0
      %v582 = vadd.f32 0.0, %v581
      %583 = vmatmul.f32.gmra.mxu0 %v544
      %v584 = vpop.f32.mrf.mxu0
      %v585 = vadd.f32 0.0, %v584
      %586 = vmatmul.f32.gmra.mxu0 %v547
      %v587 = vpop.f32.mrf.mxu0
      %v588 = vadd.f32 0.0, %v587
      %589 = vmatmul.f32.gmra.mxu0 %v550
      %v590 = vpop.f32.mrf.mxu0
      %v591 = vadd.f32 0.0, %v590
      %592 = vmatmul.f32.gmra.mxu0 %v553
      %v593 = vpop.f32.mrf.mxu0
      %v594 = vadd.f32 0.0, %v593
      %595 = vmatmul.f32.gmra.mxu0 %v556
      %v596 = vpop.f32.mrf.mxu0
      %v597 = vadd.f32 0.0, %v596
      %598 = vmatmul.f32.gmra.mxu0 %v559
      %v599 = vpop.f32.mrf.mxu0
      %v600 = vadd.f32 0.0, %v599
      %601 = vdwg.mxu0
      %v602 = vmul.f32 %v579, 0.0625
      %v603 = vmul.f32 %v582, 0.0625
      %v604 = vmul.f32 %v585, 0.0625
      %v605 = vmul.f32 %v588, 0.0625
      %v606 = vmul.f32 %v591, 0.0625
      %v607 = vmul.f32 %v594, 0.0625
      %v608 = vmul.f32 %v597, 0.0625
      %v609 = vmul.f32 %v600, 0.0625
      %v610 = vadd.f32 %v602, 1e-06
      %v611 = vadd.f32 %v603, 1e-06
      %v612 = vadd.f32 %v604, 1e-06
      %v613 = vadd.f32 %v605, 1e-06
      %v614 = vadd.f32 %v606, 1e-06
      %v615 = vadd.f32 %v607, 1e-06
      %v616 = vadd.f32 %v608, 1e-06
      %v617 = vadd.f32 %v609, 1e-06
      %v618 = vrsqrt.pop %v610
      %v619 = vmul.f32 %v618, %v610
      %v620 = vmul.f32 %v619, %v618
      %v621 = vmul.f32 0.5, %v620
      %v622 = vsub.f32 1.5, %v621
      %v623 = vmul.f32 %v618, %v622
      %vm624 = vweird.f32 %v610
      %vm625 = vweird.f32 %v618
      %vm626 = vmor %vm624, %vm625
      %v627 = vsel %vm626, %v618, %v623
      %v628 = vrsqrt.pop %v611
      %v629 = vmul.f32 %v628, %v611
      %v630 = vmul.f32 %v629, %v628
      %v631 = vmul.f32 0.5, %v630
      %v632 = vsub.f32 1.5, %v631
      %v633 = vmul.f32 %v628, %v632
      %vm634 = vweird.f32 %v611
      %vm635 = vweird.f32 %v628
      %vm636 = vmor %vm634, %vm635
      %v637 = vsel %vm636, %v628, %v633
      %v638 = vrsqrt.pop %v612
      %v639 = vmul.f32 %v638, %v612
      %v640 = vmul.f32 %v639, %v638
      %v641 = vmul.f32 0.5, %v640
      %v642 = vsub.f32 1.5, %v641
      %v643 = vmul.f32 %v638, %v642
      %vm644 = vweird.f32 %v612
      %vm645 = vweird.f32 %v638
      %vm646 = vmor %vm644, %vm645
      %v647 = vsel %vm646, %v638, %v643
      %v648 = vrsqrt.pop %v613
      %v649 = vmul.f32 %v648, %v613
      %v650 = vmul.f32 %v649, %v648
      %v651 = vmul.f32 0.5, %v650
      %v652 = vsub.f32 1.5, %v651
      %v653 = vmul.f32 %v648, %v652
      %vm654 = vweird.f32 %v613
      %vm655 = vweird.f32 %v648
      %vm656 = vmor %vm654, %vm655
      %v657 = vsel %vm656, %v648, %v653
      %v658 = vrsqrt.pop %v614
      %v659 = vmul.f32 %v658, %v614
      %v660 = vmul.f32 %v659, %v658
      %v661 = vmul.f32 0.5, %v660
      %v662 = vsub.f32 1.5, %v661
      %v663 = vmul.f32 %v658, %v662
      %vm664 = vweird.f32 %v614
      %vm665 = vweird.f32 %v658
      %vm666 = vmor %vm664, %vm665
      %v667 = vsel %vm666, %v658, %v663
      %v668 = vrsqrt.pop %v615
      %v669 = vmul.f32 %v668, %v615
      %v670 = vmul.f32 %v669, %v668
      %v671 = vmul.f32 0.5, %v670
      %v672 = vsub.f32 1.5, %v671
      %v673 = vmul.f32 %v668, %v672
      %vm674 = vweird.f32 %v615
      %vm675 = vweird.f32 %v668
      %vm676 = vmor %vm674, %vm675
      %v677 = vsel %vm676, %v668, %v673
      %v678 = vrsqrt.pop %v616
      %v679 = vmul.f32 %v678, %v616
      %v680 = vmul.f32 %v679, %v678
      %v681 = vmul.f32 0.5, %v680
      %v682 = vsub.f32 1.5, %v681
      %v683 = vmul.f32 %v678, %v682
      %vm684 = vweird.f32 %v616
      %vm685 = vweird.f32 %v678
      %vm686 = vmor %vm684, %vm685
      %v687 = vsel %vm686, %v678, %v683
      %v688 = vrsqrt.pop %v617
      %v689 = vmul.f32 %v688, %v617
      %v690 = vmul.f32 %v689, %v688
      %v691 = vmul.f32 0.5, %v690
      %v692 = vsub.f32 1.5, %v691
      %v693 = vmul.f32 %v688, %v692
      %vm694 = vweird.f32 %v617
      %vm695 = vweird.f32 %v688
      %vm696 = vmor %vm694, %vm695
      %v697 = vsel %vm696, %v688, %v693
      %v698 = vmul.f32 %v627, 0.25
      %v699 = vmul.f32 %v637, 0.25
      %v700 = vmul.f32 %v647, 0.25
      %v701 = vmul.f32 %v657, 0.25
      %v702 = vmul.f32 %v667, 0.25
      %v703 = vmul.f32 %v677, 0.25
      %v704 = vmul.f32 %v687, 0.25
      %v705 = vmul.f32 %v697, 0.25
      %vm706 = vcmask 15360
      %v708 = vsel %vm706, %v698, 0
      %v711 = vsel %vm706, %v699, 0
      %v714 = vsel %vm706, %v700, 0
      %v717 = vsel %vm706, %v701, 0
      %v720 = vsel %vm706, %v702, 0
      %v723 = vsel %vm706, %v703, 0
      %v726 = vsel %vm706, %v704, 0
      %v729 = vsel %vm706, %v705, 0
      %v732 = vsel %vm706, %v525, 0
      %v735 = vsel %vm706, %v526, 0
      %v738 = vsel %vm706, %v527, 0
      %v741 = vsel %vm706, %v528, 0
      %743 = vmatpush.xpose.msra.mxu0 0.0
      %744 = vmatpush.xpose.msra.mxu0 0.0
      %745 = vmatpush.xpose.msra.mxu0 0.0
      %746 = vmatpush.xpose.msra.mxu0 0.0
      %747 = vmatpush.xpose.msra.mxu0 0.0
      %748 = vmatpush.xpose.msra.mxu0 0.0
      %749 = vmatpush.xpose.msra.mxu0 0.0
      %750 = vmatpush.xpose.msra.mxu0 0.0
      %751 = vmatpush.xpose.msra.mxu0 0.0
      %752 = vmatpush.xpose.msra.mxu0 0.0
      %753 = vmatpush.xpose.msra.mxu0 0.0
      %754 = vmatpush.xpose.msra.mxu0 0.0
      %755 = vmatpush.xpose.msra.mxu0 %v741
      %756 = vmatpush.xpose.msra.mxu0 %v738
      %757 = vmatpush.xpose.msra.mxu0 %v735
      %758 = vmatpush.xpose.msra.mxu0 %v732
      %759 = vmatmul.f32.gmra.mxu0 %v708
      %v760 = vpop.f32.mrf.mxu0
      %v761 = vadd.f32 0.0, %v760
      %762 = vmatmul.f32.gmra.mxu0 %v711
      %v763 = vpop.f32.mrf.mxu0
      %v764 = vadd.f32 0.0, %v763
      %765 = vmatmul.f32.gmra.mxu0 %v714
      %v766 = vpop.f32.mrf.mxu0
      %v767 = vadd.f32 0.0, %v766
      %768 = vmatmul.f32.gmra.mxu0 %v717
      %v769 = vpop.f32.mrf.mxu0
      %v770 = vadd.f32 0.0, %v769
      %771 = vmatmul.f32.gmra.mxu0 %v720
      %v772 = vpop.f32.mrf.mxu0
      %v773 = vadd.f32 0.0, %v772
      %774 = vmatmul.f32.gmra.mxu0 %v723
      %v775 = vpop.f32.mrf.mxu0
      %v776 = vadd.f32 0.0, %v775
      %777 = vmatmul.f32.gmra.mxu0 %v726
      %v778 = vpop.f32.mrf.mxu0
      %v779 = vadd.f32 0.0, %v778
      %780 = vmatmul.f32.gmra.mxu0 %v729
      %v781 = vpop.f32.mrf.mxu0
      %v782 = vadd.f32 0.0, %v781
      %783 = vdwg.mxu0
      %v784 = vmul.f32 %v506, %v761
      %v785 = vmul.f32 %v508, %v764
      %v786 = vmul.f32 %v511, %v767
      %v787 = vmul.f32 %v513, %v770
      %v788 = vmul.f32 %v516, %v773
      %v789 = vmul.f32 %v518, %v776
      %v790 = vmul.f32 %v521, %v779
      %v791 = vmul.f32 %v523, %v782
      %792 = vrot.lane.b32.xlu0 %v529, 96
      %v793 = vpop.permute.xlu0 %792
      %794 = vrot.lane.b32.xlu0 %v530, 96
      %v795 = vpop.permute.xlu0 %794
      %796 = vrot.lane.b32.xlu0 %v531, 96
      %v797 = vpop.permute.xlu0 %796
      %798 = vrot.lane.b32.xlu0 %v532, 96
      %v799 = vpop.permute.xlu0 %798
      %800 = vrot.lane.b32.xlu0 %v533, 96
      %v801 = vpop.permute.xlu0 %800
      %802 = vrot.lane.b32.xlu0 %v534, 96
      %v803 = vpop.permute.xlu0 %802
      %804 = vrot.lane.b32.xlu0 %v535, 96
      %v805 = vpop.permute.xlu0 %804
      %806 = vrot.lane.b32.xlu0 %v536, 96
      %v807 = vpop.permute.xlu0 %806
      %v808 = vsel %vm328, %v793, 0
      %v810 = vsel %vm328, %v795, 0
      %v812 = vsel %vm328, %v797, 0
      %v814 = vsel %vm328, %v799, 0
      %v816 = vsel %vm328, %v801, 0
      %v818 = vsel %vm328, %v803, 0
      %v820 = vsel %vm328, %v805, 0
      %v822 = vsel %vm328, %v807, 0
      %824 = vmatpush.msra.mxu0 0.0
      %825 = vmatpush.msra.mxu0 0.0
      %826 = vmatpush.msra.mxu0 0.0
      %827 = vmatpush.msra.mxu0 0.0
      %828 = vmatpush.msra.mxu0 0.0
      %829 = vmatpush.msra.mxu0 0.0
      %830 = vmatpush.msra.mxu0 0.0
      %831 = vmatpush.msra.mxu0 0.0
      %832 = vmatpush.msra.mxu0 0.0
      %833 = vmatpush.msra.mxu0 0.0
      %834 = vmatpush.msra.mxu0 0.0
      %835 = vmatpush.msra.mxu0 0.0
      %836 = vmatpush.msra.mxu0 %v528
      %837 = vmatpush.msra.mxu0 %v527
      %838 = vmatpush.msra.mxu0 %v526
      %839 = vmatpush.msra.mxu0 %v525
      %840 = vmatmul.f32.gmra.mxu0 %v808
      %v841 = vpop.f32.mrf.mxu0
      %v842 = vadd.f32 0.0, %v841
      %843 = vmatmul.f32.gmra.mxu0 %v810
      %v844 = vpop.f32.mrf.mxu0
      %v845 = vadd.f32 0.0, %v844
      %846 = vmatmul.f32.gmra.mxu0 %v812
      %v847 = vpop.f32.mrf.mxu0
      %v848 = vadd.f32 0.0, %v847
      %849 = vmatmul.f32.gmra.mxu0 %v814
      %v850 = vpop.f32.mrf.mxu0
      %v851 = vadd.f32 0.0, %v850
      %852 = vmatmul.f32.gmra.mxu0 %v816
      %v853 = vpop.f32.mrf.mxu0
      %v854 = vadd.f32 0.0, %v853
      %855 = vmatmul.f32.gmra.mxu0 %v818
      %v856 = vpop.f32.mrf.mxu0
      %v857 = vadd.f32 0.0, %v856
      %858 = vmatmul.f32.gmra.mxu0 %v820
      %v859 = vpop.f32.mrf.mxu0
      %v860 = vadd.f32 0.0, %v859
      %861 = vmatmul.f32.gmra.mxu0 %v822
      %v862 = vpop.f32.mrf.mxu0
      %v863 = vadd.f32 0.0, %v862
      %864 = vdwg.mxu0
      %v865 = vmul.f32 %v842, 0.0625
      %v866 = vmul.f32 %v845, 0.0625
      %v867 = vmul.f32 %v848, 0.0625
      %v868 = vmul.f32 %v851, 0.0625
      %v869 = vmul.f32 %v854, 0.0625
      %v870 = vmul.f32 %v857, 0.0625
      %v871 = vmul.f32 %v860, 0.0625
      %v872 = vmul.f32 %v863, 0.0625
      %v873 = vadd.f32 %v865, 1e-06
      %v874 = vadd.f32 %v866, 1e-06
      %v875 = vadd.f32 %v867, 1e-06
      %v876 = vadd.f32 %v868, 1e-06
      %v877 = vadd.f32 %v869, 1e-06
      %v878 = vadd.f32 %v870, 1e-06
      %v879 = vadd.f32 %v871, 1e-06
      %v880 = vadd.f32 %v872, 1e-06
      %v881 = vrsqrt.pop %v873
      %v882 = vmul.f32 %v881, %v873
      %v883 = vmul.f32 %v882, %v881
      %v884 = vmul.f32 0.5, %v883
      %v885 = vsub.f32 1.5, %v884
      %v886 = vmul.f32 %v881, %v885
      %vm887 = vweird.f32 %v873
      %vm888 = vweird.f32 %v881
      %vm889 = vmor %vm887, %vm888
      %v890 = vsel %vm889, %v881, %v886
      %v891 = vrsqrt.pop %v874
      %v892 = vmul.f32 %v891, %v874
      %v893 = vmul.f32 %v892, %v891
      %v894 = vmul.f32 0.5, %v893
      %v895 = vsub.f32 1.5, %v894
      %v896 = vmul.f32 %v891, %v895
      %vm897 = vweird.f32 %v874
      %vm898 = vweird.f32 %v891
      %vm899 = vmor %vm897, %vm898
      %v900 = vsel %vm899, %v891, %v896
      %v901 = vrsqrt.pop %v875
      %v902 = vmul.f32 %v901, %v875
      %v903 = vmul.f32 %v902, %v901
      %v904 = vmul.f32 0.5, %v903
      %v905 = vsub.f32 1.5, %v904
      %v906 = vmul.f32 %v901, %v905
      %vm907 = vweird.f32 %v875
      %vm908 = vweird.f32 %v901
      %vm909 = vmor %vm907, %vm908
      %v910 = vsel %vm909, %v901, %v906
      %v911 = vrsqrt.pop %v876
      %v912 = vmul.f32 %v911, %v876
      %v913 = vmul.f32 %v912, %v911
      %v914 = vmul.f32 0.5, %v913
      %v915 = vsub.f32 1.5, %v914
      %v916 = vmul.f32 %v911, %v915
      %vm917 = vweird.f32 %v876
      %vm918 = vweird.f32 %v911
      %vm919 = vmor %vm917, %vm918
      %v920 = vsel %vm919, %v911, %v916
      %v921 = vrsqrt.pop %v877
      %v922 = vmul.f32 %v921, %v877
      %v923 = vmul.f32 %v922, %v921
      %v924 = vmul.f32 0.5, %v923
      %v925 = vsub.f32 1.5, %v924
      %v926 = vmul.f32 %v921, %v925
      %vm927 = vweird.f32 %v877
      %vm928 = vweird.f32 %v921
      %vm929 = vmor %vm927, %vm928
      %v930 = vsel %vm929, %v921, %v926
      %v931 = vrsqrt.pop %v878
      %v932 = vmul.f32 %v931, %v878
      %v933 = vmul.f32 %v932, %v931
      %v934 = vmul.f32 0.5, %v933
      %v935 = vsub.f32 1.5, %v934
      %v936 = vmul.f32 %v931, %v935
      %vm937 = vweird.f32 %v878
      %vm938 = vweird.f32 %v931
      %vm939 = vmor %vm937, %vm938
      %v940 = vsel %vm939, %v931, %v936
      %v941 = vrsqrt.pop %v879
      %v942 = vmul.f32 %v941, %v879
      %v943 = vmul.f32 %v942, %v941
      %v944 = vmul.f32 0.5, %v943
      %v945 = vsub.f32 1.5, %v944
      %v946 = vmul.f32 %v941, %v945
      %vm947 = vweird.f32 %v879
      %vm948 = vweird.f32 %v941
      %vm949 = vmor %vm947, %vm948
      %v950 = vsel %vm949, %v941, %v946
      %v951 = vrsqrt.pop %v880
      %v952 = vmul.f32 %v951, %v880
      %v953 = vmul.f32 %v952, %v951
      %v954 = vmul.f32 0.5, %v953
      %v955 = vsub.f32 1.5, %v954
      %v956 = vmul.f32 %v951, %v955
      %vm957 = vweird.f32 %v880
      %vm958 = vweird.f32 %v951
      %vm959 = vmor %vm957, %vm958
      %v960 = vsel %vm959, %v951, %v956
      %v962 = vsel %vm706, %v890, 0
      %v965 = vsel %vm706, %v900, 0
      %v968 = vsel %vm706, %v910, 0
      %v971 = vsel %vm706, %v920, 0
      %v974 = vsel %vm706, %v930, 0
      %v977 = vsel %vm706, %v940, 0
      %v980 = vsel %vm706, %v950, 0
      %v983 = vsel %vm706, %v960, 0
      %985 = vmatpush.xpose.msra.mxu0 0.0
      %986 = vmatpush.xpose.msra.mxu0 0.0
      %987 = vmatpush.xpose.msra.mxu0 0.0
      %988 = vmatpush.xpose.msra.mxu0 0.0
      %989 = vmatpush.xpose.msra.mxu0 0.0
      %990 = vmatpush.xpose.msra.mxu0 0.0
      %991 = vmatpush.xpose.msra.mxu0 0.0
      %992 = vmatpush.xpose.msra.mxu0 0.0
      %993 = vmatpush.xpose.msra.mxu0 0.0
      %994 = vmatpush.xpose.msra.mxu0 0.0
      %995 = vmatpush.xpose.msra.mxu0 0.0
      %996 = vmatpush.xpose.msra.mxu0 0.0
      %997 = vmatpush.xpose.msra.mxu0 %v741
      %998 = vmatpush.xpose.msra.mxu0 %v738
      %999 = vmatpush.xpose.msra.mxu0 %v735
      %1000 = vmatpush.xpose.msra.mxu0 %v732
      %1001 = vmatmul.f32.gmra.mxu0 %v962
      %v1002 = vpop.f32.mrf.mxu0
      %v1003 = vadd.f32 0.0, %v1002
      %1004 = vmatmul.f32.gmra.mxu0 %v965
      %v1005 = vpop.f32.mrf.mxu0
      %v1006 = vadd.f32 0.0, %v1005
      %1007 = vmatmul.f32.gmra.mxu0 %v968
      %v1008 = vpop.f32.mrf.mxu0
      %v1009 = vadd.f32 0.0, %v1008
      %1010 = vmatmul.f32.gmra.mxu0 %v971
      %v1011 = vpop.f32.mrf.mxu0
      %v1012 = vadd.f32 0.0, %v1011
      %1013 = vmatmul.f32.gmra.mxu0 %v974
      %v1014 = vpop.f32.mrf.mxu0
      %v1015 = vadd.f32 0.0, %v1014
      %1016 = vmatmul.f32.gmra.mxu0 %v977
      %v1017 = vpop.f32.mrf.mxu0
      %v1018 = vadd.f32 0.0, %v1017
      %1019 = vmatmul.f32.gmra.mxu0 %v980
      %v1020 = vpop.f32.mrf.mxu0
      %v1021 = vadd.f32 0.0, %v1020
      %1022 = vmatmul.f32.gmra.mxu0 %v983
      %v1023 = vpop.f32.mrf.mxu0
      %v1024 = vadd.f32 0.0, %v1023
      %1025 = vdwg.mxu0
      %1034 = vrot.lane.b32.xlu0 %v1003, 32
      %v1035 = vpop.permute.xlu0 %1034
      %1036 = vrot.lane.b32.xlu0 %v1006, 32
      %v1037 = vpop.permute.xlu0 %1036
      %1038 = vrot.lane.b32.xlu0 %v1009, 32
      %v1039 = vpop.permute.xlu0 %1038
      %1040 = vrot.lane.b32.xlu0 %v1012, 32
      %v1041 = vpop.permute.xlu0 %1040
      %1042 = vrot.lane.b32.xlu0 %v1015, 32
      %v1043 = vpop.permute.xlu0 %1042
      %1044 = vrot.lane.b32.xlu0 %v1018, 32
      %v1045 = vpop.permute.xlu0 %1044
      %1046 = vrot.lane.b32.xlu0 %v1021, 32
      %v1047 = vpop.permute.xlu0 %1046
      %1048 = vrot.lane.b32.xlu0 %v1024, 32
      %v1049 = vpop.permute.xlu0 %1048
      %v1058 = vmul.f32 %v506, %v1035
      %v1059 = vmul.f32 %v508, %v1037
      %v1060 = vmul.f32 %v511, %v1039
      %v1061 = vmul.f32 %v513, %v1041
      %v1062 = vmul.f32 %v516, %v1043
      %v1063 = vmul.f32 %v518, %v1045
      %v1064 = vmul.f32 %v521, %v1047
      %v1065 = vmul.f32 %v523, %v1049
      %v1066 = vpack.c.bf16 %v784, %v784
      %v1067 = vpack.c.bf16 %v785, %v785
      %v1068 = vpack.c.bf16 %v786, %v786
      %v1069 = vpack.c.bf16 %v787, %v787
      %v1070 = vpack.c.bf16 %v788, %v788
      %v1071 = vpack.c.bf16 %v789, %v789
      %v1072 = vpack.c.bf16 %v790, %v790
      %v1073 = vpack.c.bf16 %v791, %v791
      %vm1074 = vcmask 257024
      %1075 = vst.msk [vmem:[%s289] sm:$0xf] %vm1074, %v1066
      %1076 = vst.msk [vmem:[%s289 + $0x4] sm:$0xf] %vm1074, %v1067
      %1077 = vst.msk [vmem:[%s289 + $0x8] sm:$0xf] %vm1074, %v1068
      %1078 = vst.msk [vmem:[%s289 + $0xc] sm:$0xf] %vm1074, %v1069
      %1079 = vst.msk [vmem:[%s289 + $0x10] sm:$0xf] %vm1074, %v1070
      %1080 = vst.msk [vmem:[%s289 + $0x14] sm:$0xf] %vm1074, %v1071
      %1081 = vst.msk [vmem:[%s289 + $0x18] sm:$0xf] %vm1074, %v1072
      %1082 = vst.msk [vmem:[%s289 + $0x1c] sm:$0xf] %vm1074, %v1073
      %v1083 = vpack.c.bf16 %v1058, %v1058
      %v1084 = vpack.c.bf16 %v1059, %v1059
      %v1085 = vpack.c.bf16 %v1060, %v1060
      %v1086 = vpack.c.bf16 %v1061, %v1061
      %v1087 = vpack.c.bf16 %v1062, %v1062
      %v1088 = vpack.c.bf16 %v1063, %v1063
      %v1089 = vpack.c.bf16 %v1064, %v1064
      %v1090 = vpack.c.bf16 %v1065, %v1065
      %1099 = vrot.lane.b32.xlu0 %v1083, 96
      %v1100 = vpop.permute.xlu0 %1099
      %1101 = vrot.lane.b32.xlu0 %v1084, 96
      %v1102 = vpop.permute.xlu0 %1101
      %1103 = vrot.lane.b32.xlu0 %v1085, 96
      %v1104 = vpop.permute.xlu0 %1103
      %1105 = vrot.lane.b32.xlu0 %v1086, 96
      %v1106 = vpop.permute.xlu0 %1105
      %1107 = vrot.lane.b32.xlu0 %v1087, 96
      %v1108 = vpop.permute.xlu0 %1107
      %1109 = vrot.lane.b32.xlu0 %v1088, 96
      %v1110 = vpop.permute.xlu0 %1109
      %1111 = vrot.lane.b32.xlu0 %v1089, 96
      %v1112 = vpop.permute.xlu0 %1111
      %1113 = vrot.lane.b32.xlu0 %v1090, 96
      %v1114 = vpop.permute.xlu0 %1113
      %1123 = vst.msk [vmem:[%s299] sm:$0xf] %vm1074, %v1100
      %1124 = vst.msk [vmem:[%s299 + $0x4] sm:$0xf] %vm1074, %v1102
      %1125 = vst.msk [vmem:[%s299 + $0x8] sm:$0xf] %vm1074, %v1104
      %1126 = vst.msk [vmem:[%s299 + $0xc] sm:$0xf] %vm1074, %v1106
      %1127 = vst.msk [vmem:[%s299 + $0x10] sm:$0xf] %vm1074, %v1108
      %1128 = vst.msk [vmem:[%s299 + $0x14] sm:$0xf] %vm1074, %v1110
      %1129 = vst.msk [vmem:[%s299 + $0x18] sm:$0xf] %vm1074, %v1112
      %1130 = vst.msk [vmem:[%s299 + $0x1c] sm:$0xf] %vm1074, %v1114
      %v1131 = vpack.c.bf16 %v506, %v506
      %v1132 = vpack.c.bf16 %v508, %v508
      %v1133 = vpack.c.bf16 %v511, %v511
      %v1134 = vpack.c.bf16 %v513, %v513
      %v1135 = vpack.c.bf16 %v516, %v516
      %v1136 = vpack.c.bf16 %v518, %v518
      %v1137 = vpack.c.bf16 %v521, %v521
      %v1138 = vpack.c.bf16 %v523, %v523
      %1147 = vrot.lane.b32.xlu0 %v1131, 64
      %v1148 = vpop.permute.xlu0 %1147
      %1149 = vrot.lane.b32.xlu0 %v1132, 64
      %v1150 = vpop.permute.xlu0 %1149
      %1151 = vrot.lane.b32.xlu0 %v1133, 64
      %v1152 = vpop.permute.xlu0 %1151
      %1153 = vrot.lane.b32.xlu0 %v1134, 64
      %v1154 = vpop.permute.xlu0 %1153
      %1155 = vrot.lane.b32.xlu0 %v1135, 64
      %v1156 = vpop.permute.xlu0 %1155
      %1157 = vrot.lane.b32.xlu0 %v1136, 64
      %v1158 = vpop.permute.xlu0 %1157
      %1159 = vrot.lane.b32.xlu0 %v1137, 64
      %v1160 = vpop.permute.xlu0 %1159
      %1161 = vrot.lane.b32.xlu0 %v1138, 64
      %v1162 = vpop.permute.xlu0 %1161
      %1171 = vst.msk [vmem:[%s309] sm:$0xf] %vm1074, %v1148
      %1172 = vst.msk [vmem:[%s309 + $0x4] sm:$0xf] %vm1074, %v1150
      %1173 = vst.msk [vmem:[%s309 + $0x8] sm:$0xf] %vm1074, %v1152
      %1174 = vst.msk [vmem:[%s309 + $0xc] sm:$0xf] %vm1074, %v1154
      %1175 = vst.msk [vmem:[%s309 + $0x10] sm:$0xf] %vm1074, %v1156
      %1176 = vst.msk [vmem:[%s309 + $0x14] sm:$0xf] %vm1074, %v1158
      %1177 = vst.msk [vmem:[%s309 + $0x18] sm:$0xf] %vm1074, %v1160
      %1178 = vst.msk [vmem:[%s309 + $0x1c] sm:$0xf] %vm1074, %v1162
      %s1179 = smul.u32 8, %s22
      %p1180 = scmp.lt.s32.totalorder %s21, 1
      %s1181 = scalar_select %p1180, %s21, 1
      %p1182 = scmp.lt.s32.totalorder %s1179, 7
      %s1183 = scalar_select %p1182, %s1179, 7
      %s1184 = smul.addr %s1181, 8
      %s1185 = sadd.s32 %s1183, %s1184
      %s1186 = smul.addr %s1185, 4
      %s1187 = scalar_lea.vmem %s3, %s1186
      %s1188 = smul.u32 8, %s22
      %p1189 = scmp.lt.s32.totalorder %s21, 1
      %s1190 = scalar_select %p1189, %s21, 1
      %p1191 = scmp.lt.s32.totalorder %s1188, 7
      %s1192 = scalar_select %p1191, %s1188, 7
      %s1193 = smul.addr %s1190, 8
      %s1194 = sadd.s32 %s1192, %s1193
      %s1195 = smul.addr %s1194, 4
      %s1196 = scalar_lea.vmem %s4, %s1195
      %s1197 = smul.u32 8, %s22
      %p1198 = scmp.lt.s32.totalorder %s21, 1
      %s1199 = scalar_select %p1198, %s21, 1
      %p1200 = scmp.lt.s32.totalorder %s1197, 7
      %s1201 = scalar_select %p1200, %s1197, 7
      %s1202 = smul.addr %s1199, 8
      %s1203 = sadd.s32 %s1201, %s1202
      %s1204 = smul.addr %s1203, 4
      %s1205 = scalar_lea.vmem %s5, %s1204
      // Predicated region
      $region33: #{tpu_custom_call.1} parent=31 // pred_check
        %p1206 = pneg %p119
      $region34: #{tpu_custom_call.1} parent=31 // pred_check_branch
        %1208 = sbr.rel (%p1206) target = $region36
      $region35: #{tpu_custom_call.1} parent=31 // pred_region
        %s1209 = smul.u32 8, %s22
      $region36: #{tpu_custom_call.1} parent=31 // pred_fallthru
        _
      // Predicated region
      $region37: #{tpu_custom_call.1} parent=31 // pred_check
        %p1210 = pneg %p147
      $region38: #{tpu_custom_call.1} parent=31 // pred_check_branch
        %1212 = sbr.rel (%p1210) target = $region40
      $region39: #{tpu_custom_call.1} parent=31 // pred_region
        %s1213 = smul.u32 8, %s22
      $region40: #{tpu_custom_call.1} parent=31 // pred_fallthru
        _
      // Predicated region
      $region41: #{tpu_custom_call.1} parent=31 // pred_check
        %p1214 = pneg %p175
      $region42: #{tpu_custom_call.1} parent=31 // pred_check_branch
        %1216 = sbr.rel (%p1214) target = $region44
      $region43: #{tpu_custom_call.1} parent=31 // pred_region
        %s1217 = smul.u32 8, %s22
      $region44: #{tpu_custom_call.1} parent=31 // pred_fallthru
        _
    $region32: #{tpu_custom_call.1} parent=5 // pred_fallthru
      _
    %p1218 = scmp.le.s32.totalorder 2, %s12
    // Predicated region
    $region45: #{tpu_custom_call.1} parent=5 // pred_check
      %p1219 = pneg %p1218
    $region46: #{tpu_custom_call.1} parent=5 // pred_check_branch
      %1221 = sbr.rel (%p1219) target = $region48
    $region47: #{tpu_custom_call.1} parent=5 // pred_region
      %s1222 = ssub.s32 %s12, 2
      // Predicated region
      $region49: #{tpu_custom_call.1} parent=47 // pred_check
        %p1223 = pneg %p125
      $region50: #{tpu_custom_call.1} parent=47 // pred_check_branch
        %1225 = sbr.rel (%p1223) target = $region52
      $region51: #{tpu_custom_call.1} parent=47 // pred_region
        %s1226 = smul.u32 8, %s24
        %p1227 = scmp.lt.s32.totalorder %s23, 1
        %s1228 = scalar_select %p1227, %s23, 1
        %p1229 = scmp.lt.s32.totalorder %s1226, 7
        %s1230 = scalar_select %p1229, %s1226, 7
        %s1231 = smul.addr %s1228, 8
        %s1232 = sadd.s32 %s1230, %s1231
        %s1233 = smul.addr %s1232, 4
        %s1234 = scalar_lea.vmem %s3, %s1233
      $region52: #{tpu_custom_call.1} parent=47 // pred_fallthru
        _
      // Predicated region
      $region53: #{tpu_custom_call.1} parent=47 // pred_check
        %p1235 = pneg %p153
      $region54: #{tpu_custom_call.1} parent=47 // pred_check_branch
        %1237 = sbr.rel (%p1235) target = $region56
      $region55: #{tpu_custom_call.1} parent=47 // pred_region
        %s1238 = smul.u32 8, %s24
        %p1239 = scmp.lt.s32.totalorder %s23, 1
        %s1240 = scalar_select %p1239, %s23, 1
        %p1241 = scmp.lt.s32.totalorder %s1238, 7
        %s1242 = scalar_select %p1241, %s1238, 7
        %s1243 = smul.addr %s1240, 8
        %s1244 = sadd.s32 %s1242, %s1243
        %s1245 = smul.addr %s1244, 4
        %s1246 = scalar_lea.vmem %s4, %s1245
      $region56: #{tpu_custom_call.1} parent=47 // pred_fallthru
        _
      // Predicated region
      $region57: #{tpu_custom_call.1} parent=47 // pred_check
        %p1247 = pneg %p181
      $region58: #{tpu_custom_call.1} parent=47 // pred_check_branch
        %1249 = sbr.rel (%p1247) target = $region60
      $region59: #{tpu_custom_call.1} parent=47 // pred_region
        %s1250 = smul.u32 8, %s24
        %p1251 = scmp.lt.s32.totalorder %s23, 1
        %s1252 = scalar_select %p1251, %s23, 1
        %p1253 = scmp.lt.s32.totalorder %s1250, 7
        %s1254 = scalar_select %p1253, %s1250, 7
        %s1255 = smul.addr %s1252, 8
        %s1256 = sadd.s32 %s1254, %s1255
        %s1257 = smul.addr %s1256, 4
        %s1258 = scalar_lea.vmem %s5, %s1257
      $region60: #{tpu_custom_call.1} parent=47 // pred_fallthru
        _
    $region48: #{tpu_custom_call.1} parent=5 // pred_fallthru
      _
  $region6: #{tpu_custom_call.1} parent=0 // loop_footer
    %s16 = sadd.s32 1, %s12
  $region7: #{tpu_custom_call.1} parent=0 // loop_footer_branch
    %11 = sbr.rel target = $region3
  $region8: #{tpu_custom_call.1} parent=0 // loop_exit
    _

</llo_original>
